<compile_context>
chip_gen: v6e
topology: v6e:2x2x1
jax: 0.10.0
libtpu: 0.0.40
codegen_flags: <defaults>
</compile_context>

<pallas_src>
import functools

import jax
import jax.numpy as jnp
from jax import lax
from jax.experimental import pallas as pl
from jax.experimental.pallas import tpu as pltpu

_LANE = 128


def _regression_kernel(x_ref, w1t_ref, w2_ref, o_ref):
    # One (row-tile i, col-tile n) step of z = relu(x @ W1^T) @ W2^T.
    #   x_ref  : (tm, H)   tile of flattened input rows (bf16 or f32)
    #   w1t_ref: (H, tn)   column tile of W1^T (pre-transposed in wrapper)
    #   w2_ref : (1, tn)   matching slice of W2, kept in f32
    #   o_ref  : (1, tm)   lane-dense f32 output tile, accumulated over n
    n = pl.program_id(1)

    @pl.when(n == 0)
    def _():
        o_ref[...] = jnp.zeros_like(o_ref)

    # Linear(H, H, bias=False), column tile: h = x @ W1^T[:, n-tile]   (MXU).
    h = jnp.dot(x_ref[...], w1t_ref[...], preferred_element_type=jnp.float32)
    # ReLU (VPU).  Elementwise per column -> partial sums over n tiles are exact.
    h = jnp.maximum(h, 0.0)

    # Linear(H, 1, bias=False), emitted transposed so the result is lane-dense:
    #   z[0, m] += sum_k W2[0, k] * h[m, k]   -> (1, tm)
    z = lax.dot_general(
        w2_ref[...], h,
        dimension_numbers=(((1,), (1,)), ((), ())),
        preferred_element_type=jnp.float32,
    )
    o_ref[...] += z


def _round_down(v, m):
    return (v // m) * m


def _pick_tm(M, H, itemsize, tm_requested):
    m_ceil = max(_LANE, pl.cdiv(M, _LANE) * _LANE)
    if tm_requested is not None:
        tm = max(_LANE, _round_down(int(tm_requested), _LANE))
        return min(tm, m_ceil)
    # Bytes-per-tile target: ~4 MiB of x per row tile.  Amortizes the ~0.35us
    # per-grid-step overhead (critical for small H, where a fixed 512-row tile
    # is only tens of KiB and sits far below the HBM roofline).
    tm = (4 << 20) // max(H * itemsize, 1)
    tm = max(256, min(int(tm), 4096))
    tm = _round_down(tm, 256)                  # v6e/v7x MXU output tiles are 256 wide
    tm = min(tm, m_ceil)
    tm = max(_LANE, _round_down(tm, _LANE))
    # Aim for >= 4 grid steps (2 per v7x TensorCore) when M allows, so both
    # megacore TCs get work and the x DMA has something to hide behind.
    while tm > _LANE and pl.cdiv(M, tm) < 4 and m_ceil >= 4 * _LANE:
        tm = max(_LANE, _round_down(tm // 2, _LANE))
    return tm


def _pick_tn(H, itemsize):
    # Keep the whole W1^T resident (single n step, single-buffered) when it is
    # small; otherwise stream (H, tn) column tiles so VMEM is bounded
    # independently of H (v7x: 64 MiB per TensorCore).
    if H * H * itemsize <= (8 << 20):
        return H
    tn = (4 << 20) // max(H * itemsize, 1)
    tn = max(_LANE, _round_down(int(tn), _LANE))
    return min(tn, max(_LANE, _round_down(H, _LANE)))


def _single_buffered_spec(block_shape, index_map):
    # Grid-invariant block: only DMA'd once, so one VMEM buffer is enough.
    try:
        return pl.BlockSpec(block_shape, index_map, pipeline_mode=pl.Buffered(1))
    except Exception:  # older jax without pipeline_mode / Buffered
        return pl.BlockSpec(block_shape, index_map)


@functools.partial(jax.jit, static_argnames=("tm", "use_bf16"))
def regression_forward(x, w1, w2, *, tm=None, use_bf16=True):
    """x: (B, S, H). w1: (H, H), w2: (1, H) in PyTorch (out, in) layout.

    Returns the same result as the PyTorch module's forward (f32 output).
    """
    B, S, H = x.shape
    M = B * S
    x2d = x.reshape(M, H)

    # One-time tiny transpose outside the kernel: (out, in) -> (in, out).
    w1t = jnp.transpose(w1)
    # W2 stays f32 even on the bf16 path (1xH: negligible traffic, and it
    # avoids both precision loss and a per-grid-step cast in the kernel).
    w2f = w2.astype(jnp.float32)

    if use_bf16:
        # Halve HBM traffic for x / W1 and use the native bf16 MXU path.
        # Accumulation stays f32 inside the kernel (preferred_element_type).
        x2d = x2d.astype(jnp.bfloat16)
        w1t = w1t.astype(jnp.bfloat16)
    itemsize = 2 if use_bf16 else 4

    # ---- Tiling -------------------------------------------------------------
    tm = _pick_tm(M, H, itemsize, tm)
    m_pad = pl.cdiv(M, tm) * tm
    if m_pad != M:
        x2d = jnp.pad(x2d, ((0, m_pad - M), (0, 0)))
    grid_m = m_pad // tm

    tn = _pick_tn(H, itemsize)
    h_pad = pl.cdiv(H, tn) * tn
    grid_n = h_pad // tn
    if h_pad != H:
        # Zero-padded W1^T columns give h = 0 -> relu(0) = 0, and the matching
        # zero-padded W2 entries contribute 0: exact.
        w1t = jnp.pad(w1t, ((0, 0), (0, h_pad - H)))
        w2f = jnp.pad(w2f, ((0, 0), (0, h_pad - H)))

    # ---- BlockSpecs ----------------------------------------------------------
    x_spec = pl.BlockSpec((tm, H), lambda i, n: (i, 0))        # rows, pipelined
    if grid_n == 1:
        # Grid-invariant weights: single-buffer to halve their VMEM footprint.
        w1_spec = _single_buffered_spec((H, tn), lambda i, n: (0, n))
        w2_spec = _single_buffered_spec((1, tn), lambda i, n: (0, n))
        w_bufs = 1
    else:
        # Streamed column tiles of W1^T: keep default double-buffering so the
        # weight DMA hides behind the MXU.
        w1_spec = pl.BlockSpec((H, tn), lambda i, n: (0, n))
        w2_spec = pl.BlockSpec((1, tn), lambda i, n: (0, n))
        w_bufs = 2
    out_spec = pl.BlockSpec((1, tm), lambda i, n: (0, i))      # lane-dense out

    # ---- VMEM budget ---------------------------------------------------------
    est_bytes = (
        2 * tm * H * itemsize        # x tile, double-buffered
        + w_bufs * H * tn * itemsize # W1^T tile(s)
        + w_bufs * tn * 4            # W2 slice (f32)
        + 2 * tm * 4                 # f32 output tile, double-buffered
        + tm * tn * 4                # f32 `h` intermediate
        + (1 << 20)                  # compiler scratch / misc headroom
    )
    vmem_limit = None
    if est_bytes > (12 << 20):       # v5e's default scoped limit is only 16 MiB
        vmem_limit = int(min(56 << 20, est_bytes + (est_bytes >> 2)))  # v7x headroom

    # ---- Cost hint for XLA scheduling ---------------------------------------
    w1_reads = grid_m if grid_n > 1 else 1
    cost = pl.CostEstimate(
        flops=2 * M * H * H + 2 * M * H,
        transcendentals=0,
        bytes_accessed=(M * H * itemsize
                        + w1_reads * H * h_pad * itemsize
                        + h_pad * 4
                        + M * 4),
    )

    out2d = pl.pallas_call(
        _regression_kernel,
        out_shape=jax.ShapeDtypeStruct((1, m_pad), jnp.float32),
        grid_spec=pltpu.PrefetchScalarGridSpec(
            num_scalar_prefetch=0,
            grid=(grid_m, grid_n),
            in_specs=[x_spec, w1_spec, w2_spec],
            out_specs=out_spec,
        ),
        compiler_params=pltpu.CompilerParams(
            dimension_semantics=("parallel", "arbitrary"),
            vmem_limit_bytes=vmem_limit,
        ),
        cost_estimate=cost,
    )(x2d, w1t, w2f)

    # PyTorch semantics: z has shape (B, S, 1); squeeze(-1) -> (B, S);
    # the second squeeze(-1) only drops the trailing dim when S == 1.
    z = out2d[0, :M].reshape(B, S)
    if S == 1:
        z = z.reshape(B)
    return z


def _reference(x, w1, w2):
    h = jnp.maximum(jnp.einsum("bsh,oh->bso", x, w1), 0.0)
    z = jnp.einsum("bsh,oh->bso", h, w2)
    z = jnp.squeeze(z, axis=-1)
    if z.shape[-1] == 1:
        z = jnp.squeeze(z, axis=-1)
    return z


if __name__ == "__main__":
    B, S, H = 2, 8, 32  # batch=2, seq=8, n_hidden=32

    key = jax.random.PRNGKey(0)
    kx, kw1, kw2 = jax.random.split(key, 3)

    x = jax.random.normal(kx, (B, S, H), dtype=jnp.float32)
    # PyTorch Linear weight layout: (out_features, in_features).
    w1 = jax.random.normal(kw1, (H, H), dtype=jnp.float32) * (1.0 / jnp.sqrt(H))
    w2 = jax.random.normal(kw2, (1, H), dtype=jnp.float32) * (1.0 / jnp.sqrt(H))

    z_ref = _reference(x, w1, w2)

    # Exact f32 path.
    z_f32 = jax.block_until_ready(regression_forward(x, w1, w2, use_bf16=False))
    assert z_f32.shape == (B, S), z_f32.shape
    assert jnp.allclose(z_f32, z_ref, atol=1e-4, rtol=1e-4), "f32 mismatch vs reference"

    # Default path: bf16 x / W1 streams, f32 accumulation.
    z_bf16 = jax.block_until_ready(regression_forward(x, w1, w2))
    assert z_bf16.shape == (B, S), z_bf16.shape
    assert jnp.allclose(z_bf16, z_ref, atol=5e-2, rtol=5e-2), "bf16 mismatch vs reference"

    # squeeze(-1).squeeze(-1) semantics: S == 1 collapses to (B,).
    x1 = jax.random.normal(kx, (3, 1, H), dtype=jnp.float32)
    z1 = jax.block_until_ready(regression_forward(x1, w1, w2, use_bf16=False))
    assert z1.shape == (3,), z1.shape
    assert jnp.allclose(z1, _reference(x1, w1, w2), atol=1e-4, rtol=1e-4), "S==1 mismatch"

    print("KERNEL_OK")
</pallas_src>

<mosaic_0001>
module attributes {stable_mosaic.version = 11 : i64} {
  func.func @_regression_kernel(%arg0: i32, %arg1: i32, %arg2: memref<128x32xf32, #tpu.memory_space<vmem>>, %arg3: memref<32x32xf32, #tpu.memory_space<vmem>>, %arg4: memref<1x32xf32, #tpu.memory_space<vmem>>, %arg5: memref<1x128xf32, #tpu.memory_space<vmem>>) attributes {dimension_semantics = [#tpu.dimension_semantics<parallel>, #tpu.dimension_semantics<arbitrary>], iteration_bounds = array<i64: 1, 1>, scalar_prefetch = 0 : i64, scratch_operands = 0 : i64, tpu.core_type = #tpu.core_type<tc>, window_params = [{transform_indices = @transform_0, window_bounds = array<i64: 128, 32>}, {pipeline_mode = #tpu.pipeline_mode<synchronous>, transform_indices = @transform_1, window_bounds = array<i64: 32, 32>}, {pipeline_mode = #tpu.pipeline_mode<synchronous>, transform_indices = @transform_2, window_bounds = array<i64: 1, 32>}, {transform_indices = @transform_3, window_bounds = array<i64: 1, 128>}]} {
    %c0_i32 = arith.constant 0 : i32
    %0 = arith.cmpi eq, %arg1, %c0_i32 : i32
    %1 = arith.extui %0 : i1 to i32
    %c0_i32_0 = arith.constant 0 : i32
    %2 = arith.cmpi ne, %1, %c0_i32_0 : i32
    scf.if %2 {
      %cst_12 = arith.constant 0.000000e+00 : f32
      %13 = vector.broadcast %cst_12 : f32 to vector<1x128xf32>
      %c0_13 = arith.constant 0 : index
      %c0_14 = arith.constant 0 : index
      %14 = vector.load %arg5[%c0_13, %c0_14] : memref<1x128xf32, #tpu.memory_space<vmem>>, vector<1x128xf32>
      tpu.vector_store %arg5[%c0_13, %c0_14], %13 {strides = array<i32>} : memref<1x128xf32, #tpu.memory_space<vmem>>, vector<1x128xf32>,
    } else {
    }
    %c0 = arith.constant 0 : index
    %c0_1 = arith.constant 0 : index
    %3 = vector.load %arg2[%c0, %c0_1] : memref<128x32xf32, #tpu.memory_space<vmem>>, vector<128x32xf32>
    %c0_2 = arith.constant 0 : index
    %c0_3 = arith.constant 0 : index
    %4 = vector.load %arg3[%c0_2, %c0_3] : memref<32x32xf32, #tpu.memory_space<vmem>>, vector<32x32xf32>
    %cst = arith.constant dense<0.000000e+00> : vector<128x32xf32>
    %5 = tpu.matmul %3, %4, %cst {dimension_numbers = #tpu.dot_dimension_numbers<[1], [0], [0], [1], [0, 0, 1, 1], [], []>} : vector<128x32xf32>, vector<32x32xf32>, vector<128x32xf32> -> vector<128x32xf32>
    %cst_4 = arith.constant 0.000000e+00 : f32
    %6 = vector.broadcast %cst_4 : f32 to vector<128x32xf32>
    %7 = arith.maximumf %5, %6 : vector<128x32xf32>
    %c0_5 = arith.constant 0 : index
    %c0_6 = arith.constant 0 : index
    %8 = vector.load %arg4[%c0_5, %c0_6] : memref<1x32xf32, #tpu.memory_space<vmem>>, vector<1x32xf32>
    %cst_7 = arith.constant dense<0.000000e+00> : vector<1x128xf32>
    %9 = tpu.matmul %8, %7, %cst_7 {dimension_numbers = #tpu.dot_dimension_numbers<[1], [1], [0], [0], [0, 0, 1, 0], [], []>} : vector<1x32xf32>, vector<128x32xf32>, vector<1x128xf32> -> vector<1x128xf32>
    %c0_8 = arith.constant 0 : index
    %c0_9 = arith.constant 0 : index
    %10 = vector.load %arg5[%c0_8, %c0_9] : memref<1x128xf32, #tpu.memory_space<vmem>>, vector<1x128xf32>
    %11 = arith.addf %10, %9 : vector<1x128xf32>
    %c0_10 = arith.constant 0 : index
    %c0_11 = arith.constant 0 : index
    %12 = vector.load %arg5[%c0_10, %c0_11] : memref<1x128xf32, #tpu.memory_space<vmem>>, vector<1x128xf32>
    tpu.vector_store %arg5[%c0_10, %c0_11], %11 {strides = array<i32>} : memref<1x128xf32, #tpu.memory_space<vmem>>, vector<1x128xf32>,
    return
  }
  func.func @transform_0(%arg0: i32, %arg1: i32) -> (i32, i32) {
    %c0_i32 = arith.constant 0 : i32
    %c0_i32_0 = arith.constant 0 : i32
    return %arg0, %c0_i32 : i32, i32
  }
  func.func @transform_1(%arg0: i32, %arg1: i32) -> (i32, i32) {
    %c0_i32 = arith.constant 0 : i32
    %c0_i32_0 = arith.constant 0 : i32
    return %c0_i32, %arg1 : i32, i32
  }
  func.func @transform_2(%arg0: i32, %arg1: i32) -> (i32, i32) {
    %c0_i32 = arith.constant 0 : i32
    %c0_i32_0 = arith.constant 0 : i32
    return %c0_i32, %arg1 : i32, i32
  }
  func.func @transform_3(%arg0: i32, %arg1: i32) -> (i32, i32) {
    %c0_i32 = arith.constant 0 : i32
    %c0_i32_0 = arith.constant 0 : i32
    return %c0_i32, %arg0 : i32, i32
  }
}

</mosaic_0001>

<llo_original>
// kernel: squeeze.1
$region0: #{squeeze.1}
  %s0 = inlined_call_operand.vmem [shape: f32[16], index: 0, kind: input, shape index: {}]
  %s1 = inlined_call_operand.hbm [shape: f32[2,8], index: 1, kind: output, shape index: {}]
  $region1: #{squeeze.1} parent=0
    #allocation0 [shape = 'u8[1024]{0}', space=vmem, size = 0x400, scoped, tag = 'operand span for operand 1']
    #allocation1 [shape = 's32[1]{0}', space=sflag, size = 0x4, scoped, tag = 'scoped memory for squeeze.1']
    #allocation2 [shape = 'u8[4096]{0}', space=vmem, size = 0x1000, scoped, tag = 'scoped mem for output reshape']
    #allocation3 [shape = 'u8[4096]{0}', space=vmem, size = 0x1000, scoped, tag = 'scoped mem for input reshape']
    %2 = vsyncpa [#allocation1], 0
    %s4 = sshll.u32 1, 1
    %s5 = ssub.s32 %s4, 1
    %v6 = vld [vmem:[%s0] sm:%s5]
    %7 = vst [vmem:[#allocation3] sm:%s5] %v6
    %v8 = vld [vmem:[#allocation3] sm:$0x1]
    %vm9 = vcmask 64512
    %10 = vst.msk [vmem:[#allocation2] sm:$0x1] %vm9, %v8
    %v11 = vld [vmem:[#allocation3] sm:$0x1]
    %12 = vrot.lane.b32.xlu0 %v11, 120
    %v13 = vpop.permute.xlu0 %12
    %vm14 = vcmask 64512
    %s15 = scalar_lea.vmem [#allocation2], 1
    %16 = vst.msk [vmem:[%s15] sm:$0x1] %vm14, %v13
    %s18 = sshll.u32 1, 2
    %s19 = ssub.s32 %s18, 1
    %v21 = vld [vmem:[#allocation2] sm:%s19]
    %s22 = sshll.u32 1, 2
    %s23 = ssub.s32 %s22, 1
    %24 = vst [vmem:[#allocation0] sm:%s23] %v21
    %s26 = ssub.s32 32, 32
    %27 = vsyncadd [#allocation1], %s26
    %s29 = sshll.u32 [#allocation0], 4
    %s30 = int_to_ptr.vmem [resolvable:$true] %s29
    %32 = dma.vmem_to_hbm [thread:$0]  %s30, 32, %s1, [#allocation1]
    %33 = dma.done [#allocation1], 32
    %34 = vsyncpa [#allocation1], 1

// kernel: regression_forward.1
$region0: #{regression_forward.1}
  #allocation0 [shape = 'u32[]', space=smem, size = 0x4, offset = 0x4, fixed_abs, tag = 'smem constant byte address 0x4 - core index']
  #allocation1 [shape = 'u32[144,128]{1,0:T(1,128)}', space=vmem, size = 0x12000, scoped, tag = 'internal scratch']
  %s0 = inlined_call_operand.vmem [shape: f32[128,32], index: 0, kind: input, shape index: {}]
  %s1 = inlined_call_operand.vmem [shape: f32[32,32], index: 1, kind: input, shape index: {}]
  %s2 = inlined_call_operand.vmem [shape: f32[1,32], index: 2, kind: input, shape index: {}]
  %s3 = inlined_call_operand.vmem [shape: f32[1,128], index: 3, kind: output, shape index: {}]
  %s4 = sld [smem:[#allocation0]]
  $region26: #{regression_forward.1} parent=0
    _
  %s6 = ssub.s32 1, %s4
  %s7 = scalar_select 0, %s6, %s4
  // Predicated region
  $region2: #{regression_forward.1} parent=0 // pred_check
    _
  $region3: #{regression_forward.1} parent=0 // pred_check_branch
    %9 = sbr.rel (0) target = $region5
  $region4: #{regression_forward.1} parent=0 // pred_region
    _
  $region5: #{regression_forward.1} parent=0 // pred_fallthru
    _
  // Predicated region
  $region6: #{regression_forward.1} parent=0 // pred_check
    _
  $region7: #{regression_forward.1} parent=0 // pred_check_branch
    %11 = sbr.rel (0) target = $region9
  $region8: #{regression_forward.1} parent=0 // pred_region
    _
  $region9: #{regression_forward.1} parent=0 // pred_fallthru
    _
  // Predicated region
  $region10: #{regression_forward.1} parent=0 // pred_check
    _
  $region11: #{regression_forward.1} parent=0 // pred_check_branch
    %13 = sbr.rel (0) target = $region13
  $region12: #{regression_forward.1} parent=0 // pred_region
    _
  $region13: #{regression_forward.1} parent=0 // pred_fallthru
    _
  %p14 = scmp.eq.s32.totalorder 0, 0
  // Predicated region
  $region14: #{regression_forward.1} parent=0 // pred_check
    %p15 = pneg %p14
  $region15: #{regression_forward.1} parent=0 // pred_check_branch
    %17 = sbr.rel (%p15) target = $region17
  $region16: #{regression_forward.1} parent=0 // pred_region
    %18 = vst [vmem:[%s3] sm:$0x1] 0.0
  $region17: #{regression_forward.1} parent=0 // pred_fallthru
    _
  %v19 = vld [vmem:[%s0] sm:$0xff]
  %v20 = vld [vmem:[%s0 + $0x8] sm:$0xff]
  %v21 = vld [vmem:[%s0 + $0x10] sm:$0xff]
  %v22 = vld [vmem:[%s0 + $0x18] sm:$0xff]
  %v23 = vld [vmem:[%s0 + $0x20] sm:$0xff]
  %v24 = vld [vmem:[%s0 + $0x28] sm:$0xff]
  %v25 = vld [vmem:[%s0 + $0x30] sm:$0xff]
  %v26 = vld [vmem:[%s0 + $0x38] sm:$0xff]
  %v27 = vld [vmem:[%s0 + $0x40] sm:$0xff]
  %v28 = vld [vmem:[%s0 + $0x48] sm:$0xff]
  %v29 = vld [vmem:[%s0 + $0x50] sm:$0xff]
  %v30 = vld [vmem:[%s0 + $0x58] sm:$0xff]
  %v31 = vld [vmem:[%s0 + $0x60] sm:$0xff]
  %v32 = vld [vmem:[%s0 + $0x68] sm:$0xff]
  %v33 = vld [vmem:[%s0 + $0x70] sm:$0xff]
  %v34 = vld [vmem:[%s0 + $0x78] sm:$0xff]
  %v35 = vld [vmem:[%s1] sm:$0xff]
  %v36 = vld [vmem:[%s1 + $0x8] sm:$0xff]
  %v37 = vld [vmem:[%s1 + $0x10] sm:$0xff]
  %v38 = vld [vmem:[%s1 + $0x18] sm:$0xff]
  %vm39 = vcmask 261120
  %v41 = vsel %vm39, %v19, 0
  %v44 = vsel %vm39, %v20, 0
  %v47 = vsel %vm39, %v21, 0
  %v50 = vsel %vm39, %v22, 0
  %v53 = vsel %vm39, %v23, 0
  %v56 = vsel %vm39, %v24, 0
  %v59 = vsel %vm39, %v25, 0
  %v62 = vsel %vm39, %v26, 0
  %v65 = vsel %vm39, %v27, 0
  %v68 = vsel %vm39, %v28, 0
  %v71 = vsel %vm39, %v29, 0
  %v74 = vsel %vm39, %v30, 0
  %v77 = vsel %vm39, %v31, 0
  %v80 = vsel %vm39, %v32, 0
  %v83 = vsel %vm39, %v33, 0
  %v86 = vsel %vm39, %v34, 0
  %88 = vmatprep.subr.mxu0 0.0
  %89 = vmatpush1.msra.mxu0 0.0
  %90 = vmatprep.subr.mxu0 0.0
  %91 = vmatpush1.msra.mxu0 0.0
  %92 = vmatprep.subr.mxu0 0.0
  %93 = vmatpush1.msra.mxu0 0.0
  %94 = vmatprep.subr.mxu0 0.0
  %95 = vmatpush1.msra.mxu0 0.0
  %96 = vmatprep.subr.mxu0 0.0
  %97 = vmatpush1.msra.mxu0 0.0
  %98 = vmatprep.subr.mxu0 0.0
  %99 = vmatpush1.msra.mxu0 0.0
  %100 = vmatprep.subr.mxu0 0.0
  %101 = vmatpush1.msra.mxu0 0.0
  %102 = vmatprep.subr.mxu0 0.0
  %103 = vmatpush1.msra.mxu0 0.0
  %104 = vmatprep.subr.mxu0 0.0
  %105 = vmatpush1.msra.mxu0 0.0
  %106 = vmatprep.subr.mxu0 0.0
  %107 = vmatpush1.msra.mxu0 0.0
  %108 = vmatprep.subr.mxu0 0.0
  %109 = vmatpush1.msra.mxu0 0.0
  %110 = vmatprep.subr.mxu0 0.0
  %111 = vmatpush1.msra.mxu0 0.0
  %112 = vmatprep.subr.mxu0 0.0
  %113 = vmatpush1.msra.mxu0 %v38
  %114 = vmatprep.subr.mxu0 0.0
  %115 = vmatpush1.msra.mxu0 %v37
  %116 = vmatprep.subr.mxu0 0.0
  %117 = vmatpush1.msra.mxu0 %v36
  %118 = vmatprep.subr.mxu0 0.0
  %119 = vmatpush1.msra.mxu0 %v35
  %120 = vmatprep.subr.mxu0 0.0
  %121 = vmatpush2.msra.mxu0 0.0
  %122 = vmatprep.subr.mxu0 0.0
  %123 = vmatpush2.msra.mxu0 0.0
  %124 = vmatprep.subr.mxu0 0.0
  %125 = vmatpush2.msra.mxu0 0.0
  %126 = vmatprep.subr.mxu0 0.0
  %127 = vmatpush2.msra.mxu0 0.0
  %128 = vmatprep.subr.mxu0 0.0
  %129 = vmatpush2.msra.mxu0 0.0
  %130 = vmatprep.subr.mxu0 0.0
  %131 = vmatpush2.msra.mxu0 0.0
  %132 = vmatprep.subr.mxu0 0.0
  %133 = vmatpush2.msra.mxu0 0.0
  %134 = vmatprep.subr.mxu0 0.0
  %135 = vmatpush2.msra.mxu0 0.0
  %136 = vmatprep.subr.mxu0 0.0
  %137 = vmatpush2.msra.mxu0 0.0
  %138 = vmatprep.subr.mxu0 0.0
  %139 = vmatpush2.msra.mxu0 0.0
  %140 = vmatprep.subr.mxu0 0.0
  %141 = vmatpush2.msra.mxu0 0.0
  %142 = vmatprep.subr.mxu0 0.0
  %143 = vmatpush2.msra.mxu0 0.0
  %144 = vmatprep.subr.mxu0 0.0
  %145 = vmatpush2.msra.mxu0 0.0
  %146 = vmatprep.subr.mxu0 0.0
  %147 = vmatpush2.msra.mxu0 0.0
  %148 = vmatprep.subr.mxu0 0.0
  %149 = vmatpush2.msra.mxu0 0.0
  %150 = vmatprep.subr.mxu0 0.0
  %151 = vmatpush2.msra.mxu0 0.0
  %152 = vmatprep.mubr.f32.mxu0 0.0
  %153 = vmatmul.mubr.f32.gmra.mxu0 %v41
  %v154 = vpop.f32.mrf.mxu0
  %v155 = vadd.f32 0.0, %v154
  %v156 = vpop.f32.mrf.mxu0
  %157 = vmatprep.mubr.f32.mxu0 0.0
  %158 = vmatmul.mubr.f32.gmra.mxu0 %v44
  %v159 = vpop.f32.mrf.mxu0
  %v160 = vadd.f32 0.0, %v159
  %v161 = vpop.f32.mrf.mxu0
  %162 = vmatprep.mubr.f32.mxu0 0.0
  %163 = vmatmul.mubr.f32.gmra.mxu0 %v47
  %v164 = vpop.f32.mrf.mxu0
  %v165 = vadd.f32 0.0, %v164
  %v166 = vpop.f32.mrf.mxu0
  %167 = vmatprep.mubr.f32.mxu0 0.0
  %168 = vmatmul.mubr.f32.gmra.mxu0 %v50
  %v169 = vpop.f32.mrf.mxu0
  %v170 = vadd.f32 0.0, %v169
  %v171 = vpop.f32.mrf.mxu0
  %172 = vmatprep.mubr.f32.mxu0 0.0
  %173 = vmatmul.mubr.f32.gmra.mxu0 %v53
  %v174 = vpop.f32.mrf.mxu0
  %v175 = vadd.f32 0.0, %v174
  %v176 = vpop.f32.mrf.mxu0
  %177 = vmatprep.mubr.f32.mxu0 0.0
  %178 = vmatmul.mubr.f32.gmra.mxu0 %v56
  %v179 = vpop.f32.mrf.mxu0
  %v180 = vadd.f32 0.0, %v179
  %v181 = vpop.f32.mrf.mxu0
  %182 = vmatprep.mubr.f32.mxu0 0.0
  %183 = vmatmul.mubr.f32.gmra.mxu0 %v59
  %v184 = vpop.f32.mrf.mxu0
  %v185 = vadd.f32 0.0, %v184
  %v186 = vpop.f32.mrf.mxu0
  %187 = vmatprep.mubr.f32.mxu0 0.0
  %188 = vmatmul.mubr.f32.gmra.mxu0 %v62
  %v189 = vpop.f32.mrf.mxu0
  %v190 = vadd.f32 0.0, %v189
  %v191 = vpop.f32.mrf.mxu0
  %192 = vmatprep.mubr.f32.mxu0 0.0
  %193 = vmatmul.mubr.f32.gmra.mxu0 %v65
  %v194 = vpop.f32.mrf.mxu0
  %v195 = vadd.f32 0.0, %v194
  %v196 = vpop.f32.mrf.mxu0
  %197 = vmatprep.mubr.f32.mxu0 0.0
  %198 = vmatmul.mubr.f32.gmra.mxu0 %v68
  %v199 = vpop.f32.mrf.mxu0
  %v200 = vadd.f32 0.0, %v199
  %v201 = vpop.f32.mrf.mxu0
  %202 = vmatprep.mubr.f32.mxu0 0.0
  %203 = vmatmul.mubr.f32.gmra.mxu0 %v71
  %v204 = vpop.f32.mrf.mxu0
  %v205 = vadd.f32 0.0, %v204
  %v206 = vpop.f32.mrf.mxu0
  %207 = vmatprep.mubr.f32.mxu0 0.0
  %208 = vmatmul.mubr.f32.gmra.mxu0 %v74
  %v209 = vpop.f32.mrf.mxu0
  %v210 = vadd.f32 0.0, %v209
  %v211 = vpop.f32.mrf.mxu0
  %212 = vmatprep.mubr.f32.mxu0 0.0
  %213 = vmatmul.mubr.f32.gmra.mxu0 %v77
  %v214 = vpop.f32.mrf.mxu0
  %v215 = vadd.f32 0.0, %v214
  %v216 = vpop.f32.mrf.mxu0
  %217 = vmatprep.mubr.f32.mxu0 0.0
  %218 = vmatmul.mubr.f32.gmra.mxu0 %v80
  %v219 = vpop.f32.mrf.mxu0
  %v220 = vadd.f32 0.0, %v219
  %v221 = vpop.f32.mrf.mxu0
  %222 = vmatprep.mubr.f32.mxu0 0.0
  %223 = vmatmul.mubr.f32.gmra.mxu0 %v83
  %v224 = vpop.f32.mrf.mxu0
  %v225 = vadd.f32 0.0, %v224
  %v226 = vpop.f32.mrf.mxu0
  %227 = vmatprep.mubr.f32.mxu0 0.0
  %228 = vmatmul.mubr.f32.gmra.mxu0 %v86
  %v229 = vpop.f32.mrf.mxu0
  %v230 = vadd.f32 0.0, %v229
  %v231 = vpop.f32.mrf.mxu0
  %232 = vdwg.mxu0
  %v233 = vmax.f32 %v155, 0.0
  %v234 = vmax.f32 %v160, 0.0
  %v235 = vmax.f32 %v165, 0.0
  %v236 = vmax.f32 %v170, 0.0
  %v237 = vmax.f32 %v175, 0.0
  %v238 = vmax.f32 %v180, 0.0
  %v239 = vmax.f32 %v185, 0.0
  %v240 = vmax.f32 %v190, 0.0
  %v241 = vmax.f32 %v195, 0.0
  %v242 = vmax.f32 %v200, 0.0
  %v243 = vmax.f32 %v205, 0.0
  %v244 = vmax.f32 %v210, 0.0
  %v245 = vmax.f32 %v215, 0.0
  %v246 = vmax.f32 %v220, 0.0
  %v247 = vmax.f32 %v225, 0.0
  %v248 = vmax.f32 %v230, 0.0
  %v249 = vld [vmem:[%s2] sm:$0x1]
  %v251 = vsel %vm39, %v249, 0
  %v254 = vsel %vm39, %v233, 0
  %v257 = vsel %vm39, %v234, 0
  %v260 = vsel %vm39, %v235, 0
  %v263 = vsel %vm39, %v236, 0
  %v266 = vsel %vm39, %v237, 0
  %v269 = vsel %vm39, %v238, 0
  %v272 = vsel %vm39, %v239, 0
  %v275 = vsel %vm39, %v240, 0
  %v278 = vsel %vm39, %v241, 0
  %v281 = vsel %vm39, %v242, 0
  %v284 = vsel %vm39, %v243, 0
  %v287 = vsel %vm39, %v244, 0
  %v290 = vsel %vm39, %v245, 0
  %v293 = vsel %vm39, %v246, 0
  %v296 = vsel %vm39, %v247, 0
  %v299 = vsel %vm39, %v248, 0
  %301 = vmatprep.subr.mxu0 0.0
  %302 = vmatpush1.xpose.msra.mxu0 %v299
  %303 = vmatprep.subr.mxu0 0.0
  %304 = vmatpush1.xpose.msra.mxu0 %v296
  %305 = vmatprep.subr.mxu0 0.0
  %306 = vmatpush1.xpose.msra.mxu0 %v293
  %307 = vmatprep.subr.mxu0 0.0
  %308 = vmatpush1.xpose.msra.mxu0 %v290
  %309 = vmatprep.subr.mxu0 0.0
  %310 = vmatpush1.xpose.msra.mxu0 %v287
  %311 = vmatprep.subr.mxu0 0.0
  %312 = vmatpush1.xpose.msra.mxu0 %v284
  %313 = vmatprep.subr.mxu0 0.0
  %314 = vmatpush1.xpose.msra.mxu0 %v281
  %315 = vmatprep.subr.mxu0 0.0
  %316 = vmatpush1.xpose.msra.mxu0 %v278
  %317 = vmatprep.subr.mxu0 0.0
  %318 = vmatpush1.xpose.msra.mxu0 %v275
  %319 = vmatprep.subr.mxu0 0.0
  %320 = vmatpush1.xpose.msra.mxu0 %v272
  %321 = vmatprep.subr.mxu0 0.0
  %322 = vmatpush1.xpose.msra.mxu0 %v269
  %323 = vmatprep.subr.mxu0 0.0
  %324 = vmatpush1.xpose.msra.mxu0 %v266
  %325 = vmatprep.subr.mxu0 0.0
  %326 = vmatpush1.xpose.msra.mxu0 %v263
  %327 = vmatprep.subr.mxu0 0.0
  %328 = vmatpush1.xpose.msra.mxu0 %v260
  %329 = vmatprep.subr.mxu0 0.0
  %330 = vmatpush1.xpose.msra.mxu0 %v257
  %331 = vmatprep.subr.mxu0 0.0
  %332 = vmatpush1.xpose.msra.mxu0 %v254
  %333 = vmatprep.subr.mxu0 0.0
  %334 = vmatpush2.xpose.msra.mxu0 0.0
  %335 = vmatprep.subr.mxu0 0.0
  %336 = vmatpush2.xpose.msra.mxu0 0.0
  %337 = vmatprep.subr.mxu0 0.0
  %338 = vmatpush2.xpose.msra.mxu0 0.0
  %339 = vmatprep.subr.mxu0 0.0
  %340 = vmatpush2.xpose.msra.mxu0 0.0
  %341 = vmatprep.subr.mxu0 0.0
  %342 = vmatpush2.xpose.msra.mxu0 0.0
  %343 = vmatprep.subr.mxu0 0.0
  %344 = vmatpush2.xpose.msra.mxu0 0.0
  %345 = vmatprep.subr.mxu0 0.0
  %346 = vmatpush2.xpose.msra.mxu0 0.0
  %347 = vmatprep.subr.mxu0 0.0
  %348 = vmatpush2.xpose.msra.mxu0 0.0
  %349 = vmatprep.subr.mxu0 0.0
  %350 = vmatpush2.xpose.msra.mxu0 0.0
  %351 = vmatprep.subr.mxu0 0.0
  %352 = vmatpush2.xpose.msra.mxu0 0.0
  %353 = vmatprep.subr.mxu0 0.0
  %354 = vmatpush2.xpose.msra.mxu0 0.0
  %355 = vmatprep.subr.mxu0 0.0
  %356 = vmatpush2.xpose.msra.mxu0 0.0
  %357 = vmatprep.subr.mxu0 0.0
  %358 = vmatpush2.xpose.msra.mxu0 0.0
  %359 = vmatprep.subr.mxu0 0.0
  %360 = vmatpush2.xpose.msra.mxu0 0.0
  %361 = vmatprep.subr.mxu0 0.0
  %362 = vmatpush2.xpose.msra.mxu0 0.0
  %363 = vmatprep.subr.mxu0 0.0
  %364 = vmatpush2.xpose.msra.mxu0 0.0
  %365 = vmatprep.mubr.f32.mxu0 0.0
  %366 = vmatmul.mubr.f32.gmra.mxu0 %v251
  %v367 = vpop.f32.mrf.mxu0
  %v368 = vadd.f32 0.0, %v367
  %v369 = vpop.f32.mrf.mxu0
  %370 = vdwg.mxu0
  %v371 = vld [vmem:[%s3] sm:$0x1]
  %v372 = vadd.f32 %v371, %v368
  %373 = vst [vmem:[%s3] sm:$0x1] %v372
  // Predicated region
  $region18: #{regression_forward.1} parent=0 // pred_check
    _
  $region19: #{regression_forward.1} parent=0 // pred_check_branch
    %375 = sbr.rel (0) target = $region21
  $region20: #{regression_forward.1} parent=0 // pred_region
    _
  $region21: #{regression_forward.1} parent=0 // pred_fallthru
    _
  // Predicated region
  $region22: #{regression_forward.1} parent=0 // pred_check
    _
  $region23: #{regression_forward.1} parent=0 // pred_check_branch
    %377 = sbr.rel (0) target = $region25
  $region24: #{regression_forward.1} parent=0 // pred_region
    _
  $region25: #{regression_forward.1} parent=0 // pred_fallthru
    _

</llo_original>
